<compile_context>
chip_gen: v7x
topology: tpu7x:2x2x1
jax: 0.10.0
libtpu: 0.0.40
codegen_flags: <defaults>
</compile_context>

<pallas_src>
import functools

import jax
import jax.numpy as jnp
from jax.experimental import pallas as pl
from jax.experimental.pallas import tpu as pltpu

IGNORE_INDEX = 255
_TILE_TARGET = 16384                    # pixels per grid step (review: 8K-32K)
_CHUNK = 512                            # lanes per inner-loop chunk
_VMEM_INPUT_BUDGET = 8 * 1024 * 1024    # double-buffered input bytes per step


def _cdiv(a, b):
    return (a + b - 1) // b


def _round_up(x, m):
    return _cdiv(x, m) * m


def _ce_sum_kernel(r_ref, g_ref, b_ref, lbl_ref, sum_ref, cnt_ref,
                   *, hw, tiles_per_split, chunk):
    """Accumulates per-color CE numerators / valid-pixel counts.

    r/g/b_ref : (C, tile_p) logits   (classes on sublanes, pixels on lanes)
    lbl_ref   : (3, tile_p) int32 labels
    sum_ref   : (3, chunk)  f32 per-shard partial loss sums   (output block)
    cnt_ref   : (3, chunk)  f32 per-shard valid-pixel counts  (output block)
    """
    s = pl.program_id(0)        # parallel shard (per-TensorCore on v7x)
    n = pl.program_id(1)        # batch
    t = pl.program_id(2)        # pixel tile within shard

    @pl.when(jnp.logical_and(n == 0, t == 0))
    def _():
        sum_ref[...] = jnp.zeros_like(sum_ref)
        cnt_ref[...] = jnp.zeros_like(cnt_ref)

    num_classes = r_ref.shape[0]
    tile_p = lbl_ref.shape[1]
    num_chunks = tile_p // chunk

    # Global pixel offset of this (unclamped) tile; the index_map clamps the
    # DMA, the in-bounds mask below zeroes any out-of-range / duplicated work.
    tile_px0 = (s * tiles_per_split + t) * tile_p

    # Hoisted loop- and color-invariant iotas (JAX does not CSE these).
    lane = jax.lax.broadcasted_iota(jnp.int32, (1, chunk), 1)
    cls = jax.lax.broadcasted_iota(jnp.int32, (num_classes, chunk), 0)

    def body(j, carry):
        off = pl.multiple_of(j * chunk, chunk)
        rem = hw - tile_px0 - j * chunk                  # scalar, may be <= 0
        in_bounds = lane < rem                           # (1, chunk)
        lbl = lbl_ref[:, pl.ds(off, chunk)]              # (3, chunk) int32

        out = []
        for c, ref in enumerate((r_ref, g_ref, b_ref)):
            x = ref[:, pl.ds(off, chunk)].astype(jnp.float32)   # (C, chunk)
            lab = lbl[c:c + 1, :]                                # (1, chunk)

            # Numerically-stable log-sum-exp over the class (sublane) axis.
            m = jnp.max(x, axis=0, keepdims=True)
            lse = m + jnp.log(jnp.sum(jnp.exp(x - m), axis=0, keepdims=True))

            # Target-class logit via masked select (no dynamic gather on TPU).
            # TODO(synk): on v7x, if the bundle dump shows XLU binding, do this
            # and the exp-sum as ones(1,C) @ (...) on the otherwise-idle MXU.
            tgt = jnp.sum(jnp.where(lab == cls, x, 0.0), axis=0, keepdims=True)

            valid = jnp.logical_and(lab != IGNORE_INDEX, in_bounds)
            out.append(carry[2 * c] + jnp.where(valid, lse - tgt, 0.0))
            out.append(carry[2 * c + 1] + valid.astype(jnp.float32))
        return tuple(out)

    init = tuple(jnp.zeros((1, chunk), jnp.float32) for _ in range(6))
    acc = jax.lax.fori_loop(0, num_chunks, body, init)

    # One RMW per accumulator per tile (not six sublane-offset RMWs).
    sum_ref[...] += jnp.concatenate(acc[0::2], axis=0)
    cnt_ref[...] += jnp.concatenate(acc[1::2], axis=0)


def adversarial_loss(px_r, px_g, px_b, label_image):
    """px_* : (N, C, H, W) logits (f32 or bf16); label_image : (N, 3, H, W) ints."""
    N, C, H, W = px_r.shape
    HW = H * W
    logit_bytes = jnp.dtype(px_r.dtype).itemsize

    # Adaptive pixel tile: biggest multiple of 128 whose double-buffered input
    # working set (3 logit streams + labels) fits every generation's scoped
    # VMEM comfort zone (v5e's 16 MiB default is the tightest).
    per_pixel = 2 * (3 * C * logit_bytes + 3 * 4)
    tile_p = max(128,
                 (min(_TILE_TARGET, _VMEM_INPUT_BUDGET // per_pixel) // 128) * 128)
    tile_p = min(tile_p, _round_up(HW, 128))
    chunk = min(_CHUNK, tile_p)

    num_tiles = _cdiv(HW, tile_p)
    # Two "parallel" shards of the pixel-tile axis so v7x can use both
    # TensorCores; each shard owns its own (3, chunk) partial sum/count blocks.
    split = 2 if num_tiles >= 2 else 1
    tiles_per_split = _cdiv(num_tiles, split)

    # Pure reshapes (no pad, no transpose): classes land on sublanes, the
    # contiguous H*W pixels land lane-dense. Ragged tails are masked in-kernel.
    logits = [p.reshape(N, C, HW) for p in (px_r, px_g, px_b)]
    labels = label_image.reshape(N, 3, HW)
    if labels.dtype != jnp.int32:
        labels = labels.astype(jnp.int32)   # compare vs 255 only after widening

    def in_idx(s, n, t):
        # Clamp so over-hanging shard steps re-fetch the last tile; their
        # contribution is zeroed by the in-kernel bounds mask.
        return (n, 0, jnp.minimum(s * tiles_per_split + t, num_tiles - 1))

    logit_spec = pl.BlockSpec((None, C, tile_p), in_idx)
    label_spec = pl.BlockSpec((None, 3, tile_p), in_idx)
    out_spec = pl.BlockSpec((None, 3, chunk), lambda s, n, t: (s, 0, 0))

    kernel = functools.partial(_ce_sum_kernel, hw=HW,
                               tiles_per_split=tiles_per_split, chunk=chunk)

    sums, cnts = pl.pallas_call(
        kernel,
        out_shape=(jax.ShapeDtypeStruct((split, 3, chunk), jnp.float32),
                   jax.ShapeDtypeStruct((split, 3, chunk), jnp.float32)),
        grid_spec=pltpu.PrefetchScalarGridSpec(
            num_scalar_prefetch=0,
            grid=(split, N, tiles_per_split),
            in_specs=[logit_spec, logit_spec, logit_spec, label_spec],
            out_specs=[out_spec, out_spec],
        ),
        compiler_params=pltpu.CompilerParams(
            dimension_semantics=("parallel", "arbitrary", "arbitrary"),
            vmem_limit_bytes=32 * 1024 * 1024),
    )(*logits, labels)

    # Tiny plain-JAX epilogue: per-color mean over valid pixels, summed.
    # NOTE: a color with zero valid pixels gives 0/0 = NaN, matching
    # torch.nn.CrossEntropyLoss(ignore_index=...).
    loss_sum = jnp.sum(sums, axis=(0, 2))     # (3,)
    valid_cnt = jnp.sum(cnts, axis=(0, 2))    # (3,)
    return jnp.sum(loss_sum / valid_cnt)


def _ref_loss(px_r, px_g, px_b, label_image):
    """Plain-JAX reference matching torch.nn.CrossEntropyLoss(ignore_index=255)."""
    def ce(logits, tgt):
        x = jnp.transpose(logits, (0, 2, 3, 1)).reshape(-1, logits.shape[1])
        t = tgt.reshape(-1)
        valid = t != IGNORE_INDEX
        lse = jax.scipy.special.logsumexp(x, axis=-1)
        tl = jnp.take_along_axis(x, jnp.where(valid, t, 0)[:, None], axis=-1)[:, 0]
        per = jnp.where(valid, lse - tl, 0.0)
        return per.sum() / valid.sum()

    return (ce(px_r, label_image[:, 0])
            + ce(px_g, label_image[:, 1])
            + ce(px_b, label_image[:, 2]))


if __name__ == "__main__":
    key = jax.random.PRNGKey(0)
    kr, kg, kb, kl, km = jax.random.split(key, 5)

    N, C, H, W = 2, 8, 16, 16  # batch, num_classes, spatial
    px_r = jax.random.normal(kr, (N, C, H, W), jnp.float32)
    px_g = jax.random.normal(kg, (N, C, H, W), jnp.float32)
    px_b = jax.random.normal(kb, (N, C, H, W), jnp.float32)

    labels = jax.random.randint(kl, (N, 3, H, W), 0, C, jnp.int32)
    ignore_mask = jax.random.uniform(km, (N, 3, H, W)) < 0.1  # ~10% ignored
    label_image = jnp.where(ignore_mask, IGNORE_INDEX, labels)

    loss = jax.jit(adversarial_loss)(px_r, px_g, px_b, label_image)
    jax.block_until_ready(loss)

    ref = _ref_loss(px_r, px_g, px_b, label_image)
    assert jnp.allclose(loss, ref, rtol=1e-5, atol=1e-5), (loss, ref)
    print("KERNEL_OK")
</pallas_src>

<mosaic_0001>
module attributes {stable_mosaic.version = 11 : i64} {
  func.func @_ce_sum_kernel(%arg0: i32, %arg1: i32, %arg2: i32, %arg3: memref<1x8x256xf32, #tpu.memory_space<vmem>>, %arg4: memref<1x8x256xf32, #tpu.memory_space<vmem>>, %arg5: memref<1x8x256xf32, #tpu.memory_space<vmem>>, %arg6: memref<1x3x256xi32, #tpu.memory_space<vmem>>, %arg7: memref<1x3x256xf32, #tpu.memory_space<vmem>>, %arg8: memref<1x3x256xf32, #tpu.memory_space<vmem>>) attributes {dimension_semantics = [#tpu.dimension_semantics<parallel>, #tpu.dimension_semantics<arbitrary>, #tpu.dimension_semantics<arbitrary>], iteration_bounds = array<i64: 1, 2, 1>, scalar_prefetch = 0 : i64, scratch_operands = 0 : i64, tpu.core_type = #tpu.core_type<tc>, window_params = [{transform_indices = @transform_0, window_bounds = array<i64: 1, 8, 256>}, {transform_indices = @transform_1, window_bounds = array<i64: 1, 8, 256>}, {transform_indices = @transform_2, window_bounds = array<i64: 1, 8, 256>}, {transform_indices = @transform_3, window_bounds = array<i64: 1, 3, 256>}, {transform_indices = @transform_4, window_bounds = array<i64: 1, 3, 256>}, {transform_indices = @transform_5, window_bounds = array<i64: 1, 3, 256>}]} {
    %c0_i32 = arith.constant 0 : i32
    %0 = arith.cmpi eq, %arg1, %c0_i32 : i32
    %c0_i32_0 = arith.constant 0 : i32
    %1 = arith.cmpi eq, %arg2, %c0_i32_0 : i32
    %2 = arith.andi %0, %1 : i1
    %3 = arith.extui %2 : i1 to i32
    %c0_i32_1 = arith.constant 0 : i32
    %4 = arith.cmpi ne, %3, %c0_i32_1 : i32
    scf.if %4 {
      %cst_48 = arith.constant 0.000000e+00 : f32
      %127 = vector.broadcast %cst_48 : f32 to vector<3x256xf32>
      %c0_49 = arith.constant 0 : index
      %c0_50 = arith.constant 0 : index
      %c0_51 = arith.constant 0 : index
      %128 = vector.load %arg7[%c0_49, %c0_50, %c0_51] : memref<1x3x256xf32, #tpu.memory_space<vmem>>, vector<1x3x256xf32>
      %129 = vector.shape_cast %128 : vector<1x3x256xf32> to vector<3x256xf32>
      %130 = vector.shape_cast %127 : vector<3x256xf32> to vector<1x3x256xf32>
      tpu.vector_store %arg7[%c0_49, %c0_50, %c0_51], %130 {strides = array<i32>} : memref<1x3x256xf32, #tpu.memory_space<vmem>>, vector<1x3x256xf32>,
      %cst_52 = arith.constant 0.000000e+00 : f32
      %131 = vector.broadcast %cst_52 : f32 to vector<3x256xf32>
      %c0_53 = arith.constant 0 : index
      %c0_54 = arith.constant 0 : index
      %c0_55 = arith.constant 0 : index
      %132 = vector.load %arg8[%c0_53, %c0_54, %c0_55] : memref<1x3x256xf32, #tpu.memory_space<vmem>>, vector<1x3x256xf32>
      %133 = vector.shape_cast %132 : vector<1x3x256xf32> to vector<3x256xf32>
      %134 = vector.shape_cast %131 : vector<3x256xf32> to vector<1x3x256xf32>
      tpu.vector_store %arg8[%c0_53, %c0_54, %c0_55], %134 {strides = array<i32>} : memref<1x3x256xf32, #tpu.memory_space<vmem>>, vector<1x3x256xf32>,
    } else {
    }
    %c1_i32 = arith.constant 1 : i32
    %5 = arith.muli %arg0, %c1_i32 : i32
    %6 = arith.addi %5, %arg2 : i32
    %c256_i32 = arith.constant 256 : i32
    %7 = arith.muli %6, %c256_i32 : i32
    %8 = tpu.iota {dimensions = array<i32: 1>} : vector<1x256xi32>
    %9 = tpu.iota {dimensions = array<i32: 0>} : vector<8x256xi32>
    %cst = arith.constant 0.000000e+00 : f32
    %10 = vector.broadcast %cst : f32 to vector<1x256xf32>
    %cst_2 = arith.constant 0.000000e+00 : f32
    %11 = vector.broadcast %cst_2 : f32 to vector<1x256xf32>
    %cst_3 = arith.constant 0.000000e+00 : f32
    %12 = vector.broadcast %cst_3 : f32 to vector<1x256xf32>
    %cst_4 = arith.constant 0.000000e+00 : f32
    %13 = vector.broadcast %cst_4 : f32 to vector<1x256xf32>
    %cst_5 = arith.constant 0.000000e+00 : f32
    %14 = vector.broadcast %cst_5 : f32 to vector<1x256xf32>
    %cst_6 = arith.constant 0.000000e+00 : f32
    %15 = vector.broadcast %cst_6 : f32 to vector<1x256xf32>
    %c0_i32_7 = arith.constant 0 : i32
    %c256_i32_8 = arith.constant 256 : i32
    %16 = arith.muli %c0_i32_7, %c256_i32_8 : i32
    %17 = tpu.assume_multiple %16, 256 : i32
    %c256_i32_9 = arith.constant 256 : i32
    %18 = arith.subi %c256_i32_9, %7 : i32
    %c256_i32_10 = arith.constant 256 : i32
    %19 = arith.muli %c0_i32_7, %c256_i32_10 : i32
    %20 = arith.subi %18, %19 : i32
    %21 = vector.broadcast %20 : i32 to vector<1x256xi32>
    %22 = arith.cmpi slt, %8, %21 : vector<1x256xi32>
    %c0 = arith.constant 0 : index
    %c0_11 = arith.constant 0 : index
    %23 = arith.index_cast %17 : i32 to index
    %24 = vector.load %arg6[%c0, %c0_11, %23] : memref<1x3x256xi32, #tpu.memory_space<vmem>>, vector<1x3x256xi32>
    %25 = vector.shape_cast %24 : vector<1x3x256xi32> to vector<3x256xi32>
    %c0_12 = arith.constant 0 : index
    %c0_13 = arith.constant 0 : index
    %26 = arith.index_cast %17 : i32 to index
    %27 = vector.load %arg3[%c0_12, %c0_13, %26] : memref<1x8x256xf32, #tpu.memory_space<vmem>>, vector<1x8x256xf32>
    %28 = vector.shape_cast %27 : vector<1x8x256xf32> to vector<8x256xf32>
    %29 = vector.extract_strided_slice %25 {offsets = [0, 0], sizes = [1, 256], strides = [1, 1]} : vector<3x256xi32> to vector<1x256xi32>
    %cst_14 = arith.constant dense<0xFF800000> : vector<256xf32>
    %30 = vector.multi_reduction <maximumf>, %28, %cst_14 [0] : vector<8x256xf32> to vector<256xf32>
    %31 = vector.shape_cast %30 : vector<256xf32> to vector<1x256xf32>
    %32 = vector.broadcast %31 : vector<1x256xf32> to vector<8x256xf32>
    %33 = arith.subf %28, %32 : vector<8x256xf32>
    %34 = math.exp %33 : vector<8x256xf32>
    %cst_15 = arith.constant dense<0.000000e+00> : vector<256xf32>
    %35 = vector.multi_reduction <add>, %34, %cst_15 [0] : vector<8x256xf32> to vector<256xf32>
    %36 = vector.shape_cast %35 : vector<256xf32> to vector<1x256xf32>
    %37 = math.log %36 : vector<1x256xf32>
    %38 = arith.addf %31, %37 : vector<1x256xf32>
    %39 = vector.broadcast %29 : vector<1x256xi32> to vector<8x256xi32>
    %40 = arith.cmpi eq, %39, %9 : vector<8x256xi32>
    %cst_16 = arith.constant 0.000000e+00 : f32
    %41 = vector.broadcast %cst_16 : f32 to vector<8x256xf32>
    %42 = arith.select %40, %28, %41 : vector<8x256xi1>, vector<8x256xf32>
    %cst_17 = arith.constant dense<0.000000e+00> : vector<256xf32>
    %43 = vector.multi_reduction <add>, %42, %cst_17 [0] : vector<8x256xf32> to vector<256xf32>
    %44 = vector.shape_cast %43 : vector<256xf32> to vector<1x256xf32>
    %c255_i32 = arith.constant 255 : i32
    %45 = vector.broadcast %c255_i32 : i32 to vector<1x256xi32>
    %46 = arith.cmpi ne, %29, %45 : vector<1x256xi32>
    %47 = arith.andi %46, %22 : vector<1x256xi1>
    %48 = arith.subf %38, %44 : vector<1x256xf32>
    %cst_18 = arith.constant 0.000000e+00 : f32
    %49 = vector.broadcast %cst_18 : f32 to vector<1x256xf32>
    %50 = arith.select %47, %48, %49 : vector<1x256xi1>, vector<1x256xf32>
    %51 = arith.addf %10, %50 : vector<1x256xf32>
    %52 = arith.extui %47 : vector<1x256xi1> to vector<1x256xi32>
    %53 = arith.sitofp %52 : vector<1x256xi32> to vector<1x256xf32>
    %54 = arith.addf %11, %53 : vector<1x256xf32>
    %c0_19 = arith.constant 0 : index
    %c0_20 = arith.constant 0 : index
    %55 = arith.index_cast %17 : i32 to index
    %56 = vector.load %arg4[%c0_19, %c0_20, %55] : memref<1x8x256xf32, #tpu.memory_space<vmem>>, vector<1x8x256xf32>
    %57 = vector.shape_cast %56 : vector<1x8x256xf32> to vector<8x256xf32>
    %58 = vector.extract_strided_slice %25 {offsets = [1, 0], sizes = [1, 256], strides = [1, 1]} : vector<3x256xi32> to vector<1x256xi32>
    %cst_21 = arith.constant dense<0xFF800000> : vector<256xf32>
    %59 = vector.multi_reduction <maximumf>, %57, %cst_21 [0] : vector<8x256xf32> to vector<256xf32>
    %60 = vector.shape_cast %59 : vector<256xf32> to vector<1x256xf32>
    %61 = vector.broadcast %60 : vector<1x256xf32> to vector<8x256xf32>
    %62 = arith.subf %57, %61 : vector<8x256xf32>
    %63 = math.exp %62 : vector<8x256xf32>
    %cst_22 = arith.constant dense<0.000000e+00> : vector<256xf32>
    %64 = vector.multi_reduction <add>, %63, %cst_22 [0] : vector<8x256xf32> to vector<256xf32>
    %65 = vector.shape_cast %64 : vector<256xf32> to vector<1x256xf32>
    %66 = math.log %65 : vector<1x256xf32>
    %67 = arith.addf %60, %66 : vector<1x256xf32>
    %68 = vector.broadcast %58 : vector<1x256xi32> to vector<8x256xi32>
    %69 = arith.cmpi eq, %68, %9 : vector<8x256xi32>
    %cst_23 = arith.constant 0.000000e+00 : f32
    %70 = vector.broadcast %cst_23 : f32 to vector<8x256xf32>
    %71 = arith.select %69, %57, %70 : vector<8x256xi1>, vector<8x256xf32>
    %cst_24 = arith.constant dense<0.000000e+00> : vector<256xf32>
    %72 = vector.multi_reduction <add>, %71, %cst_24 [0] : vector<8x256xf32> to vector<256xf32>
    %73 = vector.shape_cast %72 : vector<256xf32> to vector<1x256xf32>
    %c255_i32_25 = arith.constant 255 : i32
    %74 = vector.broadcast %c255_i32_25 : i32 to vector<1x256xi32>
    %75 = arith.cmpi ne, %58, %74 : vector<1x256xi32>
    %76 = arith.andi %75, %22 : vector<1x256xi1>
    %77 = arith.subf %67, %73 : vector<1x256xf32>
    %cst_26 = arith.constant 0.000000e+00 : f32
    %78 = vector.broadcast %cst_26 : f32 to vector<1x256xf32>
    %79 = arith.select %76, %77, %78 : vector<1x256xi1>, vector<1x256xf32>
    %80 = arith.addf %12, %79 : vector<1x256xf32>
    %81 = arith.extui %76 : vector<1x256xi1> to vector<1x256xi32>
    %82 = arith.sitofp %81 : vector<1x256xi32> to vector<1x256xf32>
    %83 = arith.addf %13, %82 : vector<1x256xf32>
    %c0_27 = arith.constant 0 : index
    %c0_28 = arith.constant 0 : index
    %84 = arith.index_cast %17 : i32 to index
    %85 = vector.load %arg5[%c0_27, %c0_28, %84] : memref<1x8x256xf32, #tpu.memory_space<vmem>>, vector<1x8x256xf32>
    %86 = vector.shape_cast %85 : vector<1x8x256xf32> to vector<8x256xf32>
    %87 = vector.extract_strided_slice %25 {offsets = [2, 0], sizes = [1, 256], strides = [1, 1]} : vector<3x256xi32> to vector<1x256xi32>
    %cst_29 = arith.constant dense<0xFF800000> : vector<256xf32>
    %88 = vector.multi_reduction <maximumf>, %86, %cst_29 [0] : vector<8x256xf32> to vector<256xf32>
    %89 = vector.shape_cast %88 : vector<256xf32> to vector<1x256xf32>
    %90 = vector.broadcast %89 : vector<1x256xf32> to vector<8x256xf32>
    %91 = arith.subf %86, %90 : vector<8x256xf32>
    %92 = math.exp %91 : vector<8x256xf32>
    %cst_30 = arith.constant dense<0.000000e+00> : vector<256xf32>
    %93 = vector.multi_reduction <add>, %92, %cst_30 [0] : vector<8x256xf32> to vector<256xf32>
    %94 = vector.shape_cast %93 : vector<256xf32> to vector<1x256xf32>
    %95 = math.log %94 : vector<1x256xf32>
    %96 = arith.addf %89, %95 : vector<1x256xf32>
    %97 = vector.broadcast %87 : vector<1x256xi32> to vector<8x256xi32>
    %98 = arith.cmpi eq, %97, %9 : vector<8x256xi32>
    %cst_31 = arith.constant 0.000000e+00 : f32
    %99 = vector.broadcast %cst_31 : f32 to vector<8x256xf32>
    %100 = arith.select %98, %86, %99 : vector<8x256xi1>, vector<8x256xf32>
    %cst_32 = arith.constant dense<0.000000e+00> : vector<256xf32>
    %101 = vector.multi_reduction <add>, %100, %cst_32 [0] : vector<8x256xf32> to vector<256xf32>
    %102 = vector.shape_cast %101 : vector<256xf32> to vector<1x256xf32>
    %c255_i32_33 = arith.constant 255 : i32
    %103 = vector.broadcast %c255_i32_33 : i32 to vector<1x256xi32>
    %104 = arith.cmpi ne, %87, %103 : vector<1x256xi32>
    %105 = arith.andi %104, %22 : vector<1x256xi1>
    %106 = arith.subf %96, %102 : vector<1x256xf32>
    %cst_34 = arith.constant 0.000000e+00 : f32
    %107 = vector.broadcast %cst_34 : f32 to vector<1x256xf32>
    %108 = arith.select %105, %106, %107 : vector<1x256xi1>, vector<1x256xf32>
    %109 = arith.addf %14, %108 : vector<1x256xf32>
    %110 = arith.extui %105 : vector<1x256xi1> to vector<1x256xi32>
    %111 = arith.sitofp %110 : vector<1x256xi32> to vector<1x256xf32>
    %112 = arith.addf %15, %111 : vector<1x256xf32>
    %c1_i32_35 = arith.constant 1 : i32
    %c0_36 = arith.constant 0 : index
    %c0_37 = arith.constant 0 : index
    %c0_38 = arith.constant 0 : index
    %113 = vector.load %arg7[%c0_36, %c0_37, %c0_38] : memref<1x3x256xf32, #tpu.memory_space<vmem>>, vector<1x3x256xf32>
    %114 = vector.shape_cast %113 : vector<1x3x256xf32> to vector<3x256xf32>
    %115 = tpu.concatenate %51, %80, %109 in 0 : vector<1x256xf32>, vector<1x256xf32>, vector<1x256xf32> -> vector<3x256xf32>
    %116 = arith.addf %114, %115 : vector<3x256xf32>
    %c0_39 = arith.constant 0 : index
    %c0_40 = arith.constant 0 : index
    %c0_41 = arith.constant 0 : index
    %117 = vector.load %arg7[%c0_39, %c0_40, %c0_41] : memref<1x3x256xf32, #tpu.memory_space<vmem>>, vector<1x3x256xf32>
    %118 = vector.shape_cast %117 : vector<1x3x256xf32> to vector<3x256xf32>
    %119 = vector.shape_cast %116 : vector<3x256xf32> to vector<1x3x256xf32>
    tpu.vector_store %arg7[%c0_39, %c0_40, %c0_41], %119 {strides = array<i32>} : memref<1x3x256xf32, #tpu.memory_space<vmem>>, vector<1x3x256xf32>,
    %c0_42 = arith.constant 0 : index
    %c0_43 = arith.constant 0 : index
    %c0_44 = arith.constant 0 : index
    %120 = vector.load %arg8[%c0_42, %c0_43, %c0_44] : memref<1x3x256xf32, #tpu.memory_space<vmem>>, vector<1x3x256xf32>
    %121 = vector.shape_cast %120 : vector<1x3x256xf32> to vector<3x256xf32>
    %122 = tpu.concatenate %54, %83, %112 in 0 : vector<1x256xf32>, vector<1x256xf32>, vector<1x256xf32> -> vector<3x256xf32>
    %123 = arith.addf %121, %122 : vector<3x256xf32>
    %c0_45 = arith.constant 0 : index
    %c0_46 = arith.constant 0 : index
    %c0_47 = arith.constant 0 : index
    %124 = vector.load %arg8[%c0_45, %c0_46, %c0_47] : memref<1x3x256xf32, #tpu.memory_space<vmem>>, vector<1x3x256xf32>
    %125 = vector.shape_cast %124 : vector<1x3x256xf32> to vector<3x256xf32>
    %126 = vector.shape_cast %123 : vector<3x256xf32> to vector<1x3x256xf32>
    tpu.vector_store %arg8[%c0_45, %c0_46, %c0_47], %126 {strides = array<i32>} : memref<1x3x256xf32, #tpu.memory_space<vmem>>, vector<1x3x256xf32>,
    return
  }
  func.func @transform_0(%arg0: i32, %arg1: i32, %arg2: i32) -> (i32, i32, i32) {
    %c1_i32 = arith.constant 1 : i32
    %0 = arith.muli %arg0, %c1_i32 : i32
    %1 = arith.addi %0, %arg2 : i32
    %c0_i32 = arith.constant 0 : i32
    %2 = arith.minsi %1, %c0_i32 : i32
    %c0_i32_0 = arith.constant 0 : i32
    %c0_i32_1 = arith.constant 0 : i32
    return %arg1, %c0_i32_0, %2 : i32, i32, i32
  }
  func.func @transform_1(%arg0: i32, %arg1: i32, %arg2: i32) -> (i32, i32, i32) {
    %c1_i32 = arith.constant 1 : i32
    %0 = arith.muli %arg0, %c1_i32 : i32
    %1 = arith.addi %0, %arg2 : i32
    %c0_i32 = arith.constant 0 : i32
    %2 = arith.minsi %1, %c0_i32 : i32
    %c0_i32_0 = arith.constant 0 : i32
    %c0_i32_1 = arith.constant 0 : i32
    return %arg1, %c0_i32_0, %2 : i32, i32, i32
  }
  func.func @transform_2(%arg0: i32, %arg1: i32, %arg2: i32) -> (i32, i32, i32) {
    %c1_i32 = arith.constant 1 : i32
    %0 = arith.muli %arg0, %c1_i32 : i32
    %1 = arith.addi %0, %arg2 : i32
    %c0_i32 = arith.constant 0 : i32
    %2 = arith.minsi %1, %c0_i32 : i32
    %c0_i32_0 = arith.constant 0 : i32
    %c0_i32_1 = arith.constant 0 : i32
    return %arg1, %c0_i32_0, %2 : i32, i32, i32
  }
  func.func @transform_3(%arg0: i32, %arg1: i32, %arg2: i32) -> (i32, i32, i32) {
    %c1_i32 = arith.constant 1 : i32
    %0 = arith.muli %arg0, %c1_i32 : i32
    %1 = arith.addi %0, %arg2 : i32
    %c0_i32 = arith.constant 0 : i32
    %2 = arith.minsi %1, %c0_i32 : i32
    %c0_i32_0 = arith.constant 0 : i32
    %c0_i32_1 = arith.constant 0 : i32
    return %arg1, %c0_i32_0, %2 : i32, i32, i32
  }
  func.func @transform_4(%arg0: i32, %arg1: i32, %arg2: i32) -> (i32, i32, i32) {
    %c0_i32 = arith.constant 0 : i32
    %c0_i32_0 = arith.constant 0 : i32
    %c0_i32_1 = arith.constant 0 : i32
    return %arg0, %c0_i32, %c0_i32_0 : i32, i32, i32
  }
  func.func @transform_5(%arg0: i32, %arg1: i32, %arg2: i32) -> (i32, i32, i32) {
    %c0_i32 = arith.constant 0 : i32
    %c0_i32_0 = arith.constant 0 : i32
    %c0_i32_1 = arith.constant 0 : i32
    return %arg0, %c0_i32, %c0_i32_0 : i32, i32, i32
  }
}

</mosaic_0001>

<llo_original>
// kernel: adversarial_loss.1
$region0: #{adversarial_loss.1}
  #allocation0 [shape = 'u32[]', space=smem, size = 0x4, offset = 0x4, fixed_abs, tag = 'smem constant byte address 0x4 - core index']
  #allocation1 [shape = 'u32[144,128]{1,0:T(1,128)}', space=vmem, size = 0x12000, scoped, tag = 'internal scratch']
  %s0 = inlined_call_operand.vmem [shape: f32[2,8,256], index: 0, kind: input, shape index: {}]
  %s1 = inlined_call_operand.vmem [shape: f32[2,8,256], index: 1, kind: input, shape index: {}]
  %s2 = inlined_call_operand.vmem [shape: f32[2,8,256], index: 2, kind: input, shape index: {}]
  %s3 = inlined_call_operand.vmem [shape: s32[2,3,256], index: 3, kind: input, shape index: {}]
  %s4 = inlined_call_operand.vmem [shape: f32[1,3,256], index: 4, kind: output, shape index: {0}]
  %s5 = inlined_call_operand.vmem [shape: f32[1,3,256], index: 5, kind: output, shape index: {1}]
  %6 = xla_tuple %s4, %s5
  %s7 = sld [smem:[#allocation0]]
  $region61: #{adversarial_loss.1} parent=0
    _
  %s9 = ssub.s32 1, %s7
  %s10 = scalar_select 0, %s9, %s7
  loop: start=0, step=1, limit=4
  $region2: #{adversarial_loss.1} parent=0 // loop_pre_header
    _
  $region3: #{adversarial_loss.1} parent=0 // loop_header
    %s12 = sphi 0, %s16
    %p13 = scmp.ge.s32.totalorder %s12, 4
    %s19 = sphi 0, %s38
    %s20 = sphi 0, %s34
    %s21 = sphi 0, %s30
    %s22 = sphi 0, %s19
    %s23 = sphi 0, %s20
    %s24 = sphi 0, %s21
    %s25 = sphi 0, %s22
    %s26 = sphi 0, %s23
    %s27 = sphi 0, %s24
    %s49 = sphi 0, %s51
    %s52 = sphi 0, %s49
    %s53 = sphi 0, %s52
    %s69 = sphi 0, %s53
    %s83 = sphi 0, %s85
    %s86 = sphi 0, %s83
    %s87 = sphi 0, %s86
    %s103 = sphi 0, %s87
    %s117 = sphi 0, %s119
    %s120 = sphi 0, %s117
    %s121 = sphi 0, %s120
    %s137 = sphi 0, %s121
    %s151 = sphi 0, %s153
    %s154 = sphi 0, %s151
    %s155 = sphi 0, %s154
    %s171 = sphi 0, %s155
    %s177 = sphi 0, %s179
    %s180 = sphi 0, %s177
    %s181 = sphi 0, %s180
    %s197 = sphi 0, %s181
    %s203 = sphi 0, %s205
    %s206 = sphi 0, %s203
    %s207 = sphi 0, %s206
    %s223 = sphi 0, %s207
  $region4: #{adversarial_loss.1} parent=0 // loop_header_branch
    %15 = sbr.rel (%p13) target = $region8
  $region5: #{adversarial_loss.1} parent=0 // loop_body
    %s17 = ssub.s32 %s12, 1
    %s18 = ssub.s32 %s12, 2
    %s28 = sadd.s32 1, %s21
    %p29 = scmp.ge.s32.totalorder %s28, 1
    %s30 = scalar_select %p29, 0, %s28
    %s31 = sadd.s32 1, %s20
    %s32 = scalar_select %p29, %s31, %s20
    %p33 = scmp.ge.s32.totalorder %s32, 2
    %s34 = scalar_select %p33, 0, %s32
    %s35 = sadd.s32 1, %s19
    %s36 = scalar_select %p33, %s35, %s19
    %p37 = scmp.ge.s32.totalorder %s36, 1
    %s38 = scalar_select %p37, 0, %s36
    %s39 = sadd.s32 %s19, %s21
    %p40 = scmp.lt.s32.totalorder %s39, 0
    %s41 = scalar_select %p40, %s39, 0
    %s42 = sadd.s32 %s38, %s30
    %p43 = scmp.lt.s32.totalorder %s42, 0
    %s44 = scalar_select %p43, %s42, 0
    %s45 = ssub.s32 %s20, %s34
    %s46 = ssub.s32 %s41, %s44
    %s47 = sor.u32 %s45, %s46
    %p48 = scmp.eq.s32.totalorder %s47, 0
    %s50 = sadd.s32 %s49, 1
    %s51 = scalar_select %p48, %s49, %s50
    %p54 = pneg %p48
    %p55 = scmp.eq.s32.totalorder %s12, 1
    %p56 = por %p54, %p55
    %p57 = scmp.ne.s32.totalorder %s49, %s52
    %p58 = scmp.eq.s32.totalorder %s12, 0
    %p59 = por %p57, %p58
    %p60 = scmp.ne.s32.totalorder %s49, %s52
    %p61 = scmp.eq.s32.totalorder %s17, 1
    %p62 = por %p60, %p61
    %p63 = scmp.ne.s32.totalorder %s52, %s53
    %p64 = scmp.eq.s32.totalorder %s17, 0
    %p65 = por %p63, %p64
    %p66 = scmp.ne.s32.totalorder %s52, %s53
    %p67 = scmp.eq.s32.totalorder %s18, 1
    %p68 = por %p66, %p67
    %p70 = scmp.ne.s32.totalorder %s53, %s69
    %p71 = scmp.eq.s32.totalorder %s18, 0
    %p72 = por %p70, %p71
    %s73 = sadd.s32 %s19, %s21
    %p74 = scmp.lt.s32.totalorder %s73, 0
    %s75 = scalar_select %p74, %s73, 0
    %s76 = sadd.s32 %s38, %s30
    %p77 = scmp.lt.s32.totalorder %s76, 0
    %s78 = scalar_select %p77, %s76, 0
    %s79 = ssub.s32 %s20, %s34
    %s80 = ssub.s32 %s75, %s78
    %s81 = sor.u32 %s79, %s80
    %p82 = scmp.eq.s32.totalorder %s81, 0
    %s84 = sadd.s32 %s83, 1
    %s85 = scalar_select %p82, %s83, %s84
    %p88 = pneg %p82
    %p89 = scmp.eq.s32.totalorder %s12, 1
    %p90 = por %p88, %p89
    %p91 = scmp.ne.s32.totalorder %s83, %s86
    %p92 = scmp.eq.s32.totalorder %s12, 0
    %p93 = por %p91, %p92
    %p94 = scmp.ne.s32.totalorder %s83, %s86
    %p95 = scmp.eq.s32.totalorder %s17, 1
    %p96 = por %p94, %p95
    %p97 = scmp.ne.s32.totalorder %s86, %s87
    %p98 = scmp.eq.s32.totalorder %s17, 0
    %p99 = por %p97, %p98
    %p100 = scmp.ne.s32.totalorder %s86, %s87
    %p101 = scmp.eq.s32.totalorder %s18, 1
    %p102 = por %p100, %p101
    %p104 = scmp.ne.s32.totalorder %s87, %s103
    %p105 = scmp.eq.s32.totalorder %s18, 0
    %p106 = por %p104, %p105
    %s107 = sadd.s32 %s19, %s21
    %p108 = scmp.lt.s32.totalorder %s107, 0
    %s109 = scalar_select %p108, %s107, 0
    %s110 = sadd.s32 %s38, %s30
    %p111 = scmp.lt.s32.totalorder %s110, 0
    %s112 = scalar_select %p111, %s110, 0
    %s113 = ssub.s32 %s20, %s34
    %s114 = ssub.s32 %s109, %s112
    %s115 = sor.u32 %s113, %s114
    %p116 = scmp.eq.s32.totalorder %s115, 0
    %s118 = sadd.s32 %s117, 1
    %s119 = scalar_select %p116, %s117, %s118
    %p122 = pneg %p116
    %p123 = scmp.eq.s32.totalorder %s12, 1
    %p124 = por %p122, %p123
    %p125 = scmp.ne.s32.totalorder %s117, %s120
    %p126 = scmp.eq.s32.totalorder %s12, 0
    %p127 = por %p125, %p126
    %p128 = scmp.ne.s32.totalorder %s117, %s120
    %p129 = scmp.eq.s32.totalorder %s17, 1
    %p130 = por %p128, %p129
    %p131 = scmp.ne.s32.totalorder %s120, %s121
    %p132 = scmp.eq.s32.totalorder %s17, 0
    %p133 = por %p131, %p132
    %p134 = scmp.ne.s32.totalorder %s120, %s121
    %p135 = scmp.eq.s32.totalorder %s18, 1
    %p136 = por %p134, %p135
    %p138 = scmp.ne.s32.totalorder %s121, %s137
    %p139 = scmp.eq.s32.totalorder %s18, 0
    %p140 = por %p138, %p139
    %s141 = sadd.s32 %s19, %s21
    %p142 = scmp.lt.s32.totalorder %s141, 0
    %s143 = scalar_select %p142, %s141, 0
    %s144 = sadd.s32 %s38, %s30
    %p145 = scmp.lt.s32.totalorder %s144, 0
    %s146 = scalar_select %p145, %s144, 0
    %s147 = ssub.s32 %s20, %s34
    %s148 = ssub.s32 %s143, %s146
    %s149 = sor.u32 %s147, %s148
    %p150 = scmp.eq.s32.totalorder %s149, 0
    %s152 = sadd.s32 %s151, 1
    %s153 = scalar_select %p150, %s151, %s152
    %p156 = pneg %p150
    %p157 = scmp.eq.s32.totalorder %s12, 1
    %p158 = por %p156, %p157
    %p159 = scmp.ne.s32.totalorder %s151, %s154
    %p160 = scmp.eq.s32.totalorder %s12, 0
    %p161 = por %p159, %p160
    %p162 = scmp.ne.s32.totalorder %s151, %s154
    %p163 = scmp.eq.s32.totalorder %s17, 1
    %p164 = por %p162, %p163
    %p165 = scmp.ne.s32.totalorder %s154, %s155
    %p166 = scmp.eq.s32.totalorder %s17, 0
    %p167 = por %p165, %p166
    %p168 = scmp.ne.s32.totalorder %s154, %s155
    %p169 = scmp.eq.s32.totalorder %s18, 1
    %p170 = por %p168, %p169
    %p172 = scmp.ne.s32.totalorder %s155, %s171
    %p173 = scmp.eq.s32.totalorder %s18, 0
    %p174 = por %p172, %p173
    %s175 = ssub.s32 %s19, %s38
    %p176 = scmp.eq.s32.totalorder %s175, 0
    %s178 = sadd.s32 %s177, 1
    %s179 = scalar_select %p176, %s177, %s178
    %p182 = pneg %p176
    %p183 = scmp.eq.s32.totalorder %s12, 1
    %p184 = por %p182, %p183
    %p185 = scmp.ne.s32.totalorder %s177, %s180
    %p186 = scmp.eq.s32.totalorder %s12, 0
    %p187 = por %p185, %p186
    %p188 = scmp.ne.s32.totalorder %s177, %s180
    %p189 = scmp.eq.s32.totalorder %s17, 1
    %p190 = por %p188, %p189
    %p191 = scmp.ne.s32.totalorder %s180, %s181
    %p192 = scmp.eq.s32.totalorder %s17, 0
    %p193 = por %p191, %p192
    %p194 = scmp.ne.s32.totalorder %s180, %s181
    %p195 = scmp.eq.s32.totalorder %s18, 1
    %p196 = por %p194, %p195
    %p198 = scmp.ne.s32.totalorder %s181, %s197
    %p199 = scmp.eq.s32.totalorder %s18, 0
    %p200 = por %p198, %p199
    %s201 = ssub.s32 %s19, %s38
    %p202 = scmp.eq.s32.totalorder %s201, 0
    %s204 = sadd.s32 %s203, 1
    %s205 = scalar_select %p202, %s203, %s204
    %p208 = pneg %p202
    %p209 = scmp.eq.s32.totalorder %s12, 1
    %p210 = por %p208, %p209
    %p211 = scmp.ne.s32.totalorder %s203, %s206
    %p212 = scmp.eq.s32.totalorder %s12, 0
    %p213 = por %p211, %p212
    %p214 = scmp.ne.s32.totalorder %s203, %s206
    %p215 = scmp.eq.s32.totalorder %s17, 1
    %p216 = por %p214, %p215
    %p217 = scmp.ne.s32.totalorder %s206, %s207
    %p218 = scmp.eq.s32.totalorder %s17, 0
    %p219 = por %p217, %p218
    %p220 = scmp.ne.s32.totalorder %s206, %s207
    %p221 = scmp.eq.s32.totalorder %s18, 1
    %p222 = por %p220, %p221
    %p224 = scmp.ne.s32.totalorder %s207, %s223
    %p225 = scmp.eq.s32.totalorder %s18, 0
    %p226 = por %p224, %p225
    %p227 = scmp.le.s32.totalorder 1, %s12
    %p228 = scmp.lt.s32.totalorder %s12, 3
    %p229 = pnand %p227, %p228
    %p230 = pneg %p229
    // Predicated region
    $region9: #{adversarial_loss.1} parent=5 // pred_check
      _
    $region10: #{adversarial_loss.1} parent=5 // pred_check_branch
      %232 = sbr.rel (%p229) target = $region12
    $region11: #{adversarial_loss.1} parent=5 // pred_region
      %s233 = ssub.s32 %s12, 1
    $region12: #{adversarial_loss.1} parent=5 // pred_fallthru
      _
    %p234 = scmp.lt.s32.totalorder %s12, 2
    // Predicated region
    $region13: #{adversarial_loss.1} parent=5 // pred_check
      %p235 = pneg %p234
    $region14: #{adversarial_loss.1} parent=5 // pred_check_branch
      %237 = sbr.rel (%p235) target = $region16
    $region15: #{adversarial_loss.1} parent=5 // pred_region
      // Predicated region
      $region17: #{adversarial_loss.1} parent=15 // pred_check
        %p238 = pneg %p59
      $region18: #{adversarial_loss.1} parent=15 // pred_check_branch
        %240 = sbr.rel (%p238) target = $region20
      $region19: #{adversarial_loss.1} parent=15 // pred_region
        %s241 = sadd.s32 %s19, %s21
        %p242 = scmp.lt.s32.totalorder %s241, 0
        %s243 = scalar_select %p242, %s241, 0
        %s244 = smul.u32 2, %s243
        %p245 = scmp.lt.s32.totalorder %s20, 1
        %s246 = scalar_select %p245, %s20, 1
        %p247 = scmp.lt.s32.totalorder %s244, 1
        %s248 = scalar_select %p247, %s244, 1
        %s249 = smul.addr %s246, 2
        %s250 = sadd.s32 %s248, %s249
        %s251 = smul.addr %s250, 8
        %s252 = scalar_lea.vmem %s0, %s251
        %s253 = sadd.s32 %s19, %s21
        %p254 = scmp.lt.s32.totalorder %s253, 0
        %s255 = scalar_select %p254, %s253, 0
        %s256 = smul.u32 2, %s255
      $region20: #{adversarial_loss.1} parent=15 // pred_fallthru
        _
      // Predicated region
      $region21: #{adversarial_loss.1} parent=15 // pred_check
        %p257 = pneg %p93
      $region22: #{adversarial_loss.1} parent=15 // pred_check_branch
        %259 = sbr.rel (%p257) target = $region24
      $region23: #{adversarial_loss.1} parent=15 // pred_region
        %s260 = sadd.s32 %s19, %s21
        %p261 = scmp.lt.s32.totalorder %s260, 0
        %s262 = scalar_select %p261, %s260, 0
        %s263 = smul.u32 2, %s262
        %p264 = scmp.lt.s32.totalorder %s20, 1
        %s265 = scalar_select %p264, %s20, 1
        %p266 = scmp.lt.s32.totalorder %s263, 1
        %s267 = scalar_select %p266, %s263, 1
        %s268 = smul.addr %s265, 2
        %s269 = sadd.s32 %s267, %s268
        %s270 = smul.addr %s269, 8
        %s271 = scalar_lea.vmem %s1, %s270
        %s272 = sadd.s32 %s19, %s21
        %p273 = scmp.lt.s32.totalorder %s272, 0
        %s274 = scalar_select %p273, %s272, 0
        %s275 = smul.u32 2, %s274
      $region24: #{adversarial_loss.1} parent=15 // pred_fallthru
        _
      // Predicated region
      $region25: #{adversarial_loss.1} parent=15 // pred_check
        %p276 = pneg %p127
      $region26: #{adversarial_loss.1} parent=15 // pred_check_branch
        %278 = sbr.rel (%p276) target = $region28
      $region27: #{adversarial_loss.1} parent=15 // pred_region
        %s279 = sadd.s32 %s19, %s21
        %p280 = scmp.lt.s32.totalorder %s279, 0
        %s281 = scalar_select %p280, %s279, 0
        %s282 = smul.u32 2, %s281
        %p283 = scmp.lt.s32.totalorder %s20, 1
        %s284 = scalar_select %p283, %s20, 1
        %p285 = scmp.lt.s32.totalorder %s282, 1
        %s286 = scalar_select %p285, %s282, 1
        %s287 = smul.addr %s284, 2
        %s288 = sadd.s32 %s286, %s287
        %s289 = smul.addr %s288, 8
        %s290 = scalar_lea.vmem %s2, %s289
        %s291 = sadd.s32 %s19, %s21
        %p292 = scmp.lt.s32.totalorder %s291, 0
        %s293 = scalar_select %p292, %s291, 0
        %s294 = smul.u32 2, %s293
      $region28: #{adversarial_loss.1} parent=15 // pred_fallthru
        _
      // Predicated region
      $region29: #{adversarial_loss.1} parent=15 // pred_check
        %p295 = pneg %p161
      $region30: #{adversarial_loss.1} parent=15 // pred_check_branch
        %297 = sbr.rel (%p295) target = $region32
      $region31: #{adversarial_loss.1} parent=15 // pred_region
        %s298 = sadd.s32 %s19, %s21
        %p299 = scmp.lt.s32.totalorder %s298, 0
        %s300 = scalar_select %p299, %s298, 0
        %s301 = smul.u32 2, %s300
        %p302 = scmp.lt.s32.totalorder %s20, 1
        %s303 = scalar_select %p302, %s20, 1
        %p304 = scmp.lt.s32.totalorder %s301, 1
        %s305 = scalar_select %p304, %s301, 1
        %s306 = smul.addr %s303, 2
        %s307 = sadd.s32 %s305, %s306
        %s308 = smul.addr %s307, 4
        %s309 = scalar_lea.vmem %s3, %s308
        %s310 = sadd.s32 %s19, %s21
        %p311 = scmp.lt.s32.totalorder %s310, 0
        %s312 = scalar_select %p311, %s310, 0
        %s313 = smul.u32 2, %s312
      $region32: #{adversarial_loss.1} parent=15 // pred_fallthru
        _
    $region16: #{adversarial_loss.1} parent=5 // pred_fallthru
      _
    %p314 = scmp.le.s32.totalorder 1, %s12
    %p315 = scmp.lt.s32.totalorder %s12, 3
    %p316 = pnand %p314, %p315
    %p317 = pneg %p316
    // Predicated region
    $region33: #{adversarial_loss.1} parent=5 // pred_check
      _
    $region34: #{adversarial_loss.1} parent=5 // pred_check_branch
      %319 = sbr.rel (%p316) target = $region36
    $region35: #{adversarial_loss.1} parent=5 // pred_region
      %s320 = ssub.s32 %s12, 1
      %s321 = sadd.s32 %s22, %s24
      %p322 = scmp.lt.s32.totalorder %s321, 0
      %s323 = scalar_select %p322, %s321, 0
      %s324 = smul.u32 2, %s323
      %p325 = scmp.lt.s32.totalorder %s23, 1
      %s326 = scalar_select %p325, %s23, 1
      %p327 = scmp.lt.s32.totalorder %s324, 1
      %s328 = scalar_select %p327, %s324, 1
      %s329 = smul.addr %s326, 2
      %s330 = sadd.s32 %s328, %s329
      %s331 = smul.addr %s330, 8
      %s332 = scalar_lea.vmem %s0, %s331
      %p333 = pneg %p65
      %p334 = pneg %p62
      %s335 = sadd.s32 %s22, %s24
      %p336 = scmp.lt.s32.totalorder %s335, 0
      %s337 = scalar_select %p336, %s335, 0
      %s338 = smul.u32 2, %s337
      %p339 = scmp.lt.s32.totalorder %s23, 1
      %s340 = scalar_select %p339, %s23, 1
      %p341 = scmp.lt.s32.totalorder %s338, 1
      %s342 = scalar_select %p341, %s338, 1
      %s343 = smul.addr %s340, 2
      %s344 = sadd.s32 %s342, %s343
      %s345 = smul.addr %s344, 8
      %s346 = scalar_lea.vmem %s1, %s345
      %p347 = pneg %p99
      %p348 = pneg %p96
      %s349 = sadd.s32 %s22, %s24
      %p350 = scmp.lt.s32.totalorder %s349, 0
      %s351 = scalar_select %p350, %s349, 0
      %s352 = smul.u32 2, %s351
      %p353 = scmp.lt.s32.totalorder %s23, 1
      %s354 = scalar_select %p353, %s23, 1
      %p355 = scmp.lt.s32.totalorder %s352, 1
      %s356 = scalar_select %p355, %s352, 1
      %s357 = smul.addr %s354, 2
      %s358 = sadd.s32 %s356, %s357
      %s359 = smul.addr %s358, 8
      %s360 = scalar_lea.vmem %s2, %s359
      %p361 = pneg %p133
      %p362 = pneg %p130
      %s363 = sadd.s32 %s22, %s24
      %p364 = scmp.lt.s32.totalorder %s363, 0
      %s365 = scalar_select %p364, %s363, 0
      %s366 = smul.u32 2, %s365
      %p367 = scmp.lt.s32.totalorder %s23, 1
      %s368 = scalar_select %p367, %s23, 1
      %p369 = scmp.lt.s32.totalorder %s366, 1
      %s370 = scalar_select %p369, %s366, 1
      %s371 = smul.addr %s368, 2
      %s372 = sadd.s32 %s370, %s371
      %s373 = smul.addr %s372, 4
      %s374 = scalar_lea.vmem %s3, %s373
      %p375 = pneg %p167
      %p376 = pneg %p164
      %p377 = pneg %p193
      %p378 = pneg %p190
      %p379 = scmp.lt.s32.totalorder %s22, 0
      %s380 = scalar_select %p379, %s22, 0
      %s381 = smul.addr %s380, 2
      %s382 = smul.addr %s381, 4
      %s383 = scalar_lea.vmem %s4, %s382
      %p384 = pneg %p219
      %p385 = pneg %p216
      %p386 = scmp.lt.s32.totalorder %s22, 0
      %s387 = scalar_select %p386, %s22, 0
      %s388 = smul.addr %s387, 2
      %s389 = smul.addr %s388, 4
      %s390 = scalar_lea.vmem %s5, %s389
      %s391 = sadd.s32 %s22, %s24
      %p392 = scmp.lt.s32.totalorder %s391, 0
      %s393 = scalar_select %p392, %s391, 0
      %s394 = smul.u32 2, %s393
      %p395 = scmp.lt.s32.totalorder %s23, 1
      %s396 = scalar_select %p395, %s23, 1
      %p397 = scmp.lt.s32.totalorder %s394, 1
      %s398 = scalar_select %p397, %s394, 1
      %s399 = smul.addr %s396, 2
      %s400 = sadd.s32 %s398, %s399
      %s401 = smul.addr %s400, 8
      %s402 = scalar_lea.vmem %s0, %s401
      %s403 = sadd.s32 %s22, %s24
      %p404 = scmp.lt.s32.totalorder %s403, 0
      %s405 = scalar_select %p404, %s403, 0
      %s406 = smul.u32 2, %s405
      %s407 = sadd.s32 %s22, %s24
      %p408 = scmp.lt.s32.totalorder %s407, 0
      %s409 = scalar_select %p408, %s407, 0
      %s410 = smul.u32 2, %s409
      %p411 = scmp.lt.s32.totalorder %s23, 1
      %s412 = scalar_select %p411, %s23, 1
      %p413 = scmp.lt.s32.totalorder %s410, 1
      %s414 = scalar_select %p413, %s410, 1
      %s415 = smul.addr %s412, 2
      %s416 = sadd.s32 %s414, %s415
      %s417 = smul.addr %s416, 8
      %s418 = scalar_lea.vmem %s1, %s417
      %s419 = sadd.s32 %s22, %s24
      %p420 = scmp.lt.s32.totalorder %s419, 0
      %s421 = scalar_select %p420, %s419, 0
      %s422 = smul.u32 2, %s421
      %s423 = sadd.s32 %s22, %s24
      %p424 = scmp.lt.s32.totalorder %s423, 0
      %s425 = scalar_select %p424, %s423, 0
      %s426 = smul.u32 2, %s425
      %p427 = scmp.lt.s32.totalorder %s23, 1
      %s428 = scalar_select %p427, %s23, 1
      %p429 = scmp.lt.s32.totalorder %s426, 1
      %s430 = scalar_select %p429, %s426, 1
      %s431 = smul.addr %s428, 2
      %s432 = sadd.s32 %s430, %s431
      %s433 = smul.addr %s432, 8
      %s434 = scalar_lea.vmem %s2, %s433
      %s435 = sadd.s32 %s22, %s24
      %p436 = scmp.lt.s32.totalorder %s435, 0
      %s437 = scalar_select %p436, %s435, 0
      %s438 = smul.u32 2, %s437
      %s439 = sadd.s32 %s22, %s24
      %p440 = scmp.lt.s32.totalorder %s439, 0
      %s441 = scalar_select %p440, %s439, 0
      %s442 = smul.u32 2, %s441
      %p443 = scmp.lt.s32.totalorder %s23, 1
      %s444 = scalar_select %p443, %s23, 1
      %p445 = scmp.lt.s32.totalorder %s442, 1
      %s446 = scalar_select %p445, %s442, 1
      %s447 = smul.addr %s444, 2
      %s448 = sadd.s32 %s446, %s447
      %s449 = smul.addr %s448, 4
      %s450 = scalar_lea.vmem %s3, %s449
      %s451 = sadd.s32 %s22, %s24
      %p452 = scmp.lt.s32.totalorder %s451, 0
      %s453 = scalar_select %p452, %s451, 0
      %s454 = smul.u32 2, %s453
      %p455 = scmp.lt.s32.totalorder %s22, 0
      %s456 = scalar_select %p455, %s22, 0
      %s457 = smul.addr %s456, 2
      %s458 = smul.addr %s457, 4
      %s459 = scalar_lea.vmem %s4, %s458
      %p460 = scmp.lt.s32.totalorder %s22, 0
      %s461 = scalar_select %p460, %s22, 0
      %s462 = smul.addr %s461, 2
      %s463 = smul.addr %s462, 4
      %s464 = scalar_lea.vmem %s5, %s463
      %p465 = scmp.eq.s32.totalorder %s23, 0
      %p466 = scmp.eq.s32.totalorder %s24, 0
      %p467 = pnand %p465, %p466
      %p468 = pneg %p467
      // Predicated region
      $region37: #{adversarial_loss.1} parent=35 // pred_check
        _
      $region38: #{adversarial_loss.1} parent=35 // pred_check_branch
        %470 = sbr.rel (%p467) target = $region40
      $region39: #{adversarial_loss.1} parent=35 // pred_region
        %471 = vst [vmem:[%s459] sm:$0x77] 0.0
        %472 = vst [vmem:[%s464] sm:$0x77] 0.0
      $region40: #{adversarial_loss.1} parent=35 // pred_fallthru
        _
      %s473 = sadd.s32 %s22, %s24
      %s474 = smul.u32 %s473, 256
      %v475 = vlaneseq
      %v476 = vand.u32 %v475, 127
      %v477 = vadd.s32 %v476, 128
      %v478 = vlaneseq
      %v479 = vshrl.u32 %v478, 7
      %s480 = ssub.s32 256, %s474
      %v481 = vstv %s480
      %vm482 = vcmp.lt.s32.totalorder %v476, %v481
      %vm483 = vcmp.lt.s32.totalorder %v477, %v481
      %v484 = vld [vmem:[%s450] sm:$0x77]
      %v485 = vld [vmem:[%s402] sm:$0xff]
      %v486 = vld [vmem:[%s402 + $0x8] sm:$0xff]
      %v487 = vrot.slane %v485, 4
      %v488 = vmax.f32 %v485, %v487
      %v489 = vrot.slane %v488, 2
      %v490 = vmax.f32 %v488, %v489
      %v491 = vrot.slane %v490, 1
      %v492 = vmax.f32 %v490, %v491
      %v493 = vrot.slane %v486, 4
      %v494 = vmax.f32 %v486, %v493
      %v495 = vrot.slane %v494, 2
      %v496 = vmax.f32 %v494, %v495
      %v497 = vrot.slane %v496, 1
      %v498 = vmax.f32 %v496, %v497
      %v499 = vsub.f32 %v485, %v492
      %v500 = vsub.f32 %v486, %v498
      %v501 = vmul.f32 %v499, 1.442695
      %v502 = vpow.pop %v501
      %v503 = vmul.f32 %v500, 1.442695
      %v504 = vpow.pop %v503
      %v505 = vrot.slane %v502, 4
      %v506 = vadd.f32 %v502, %v505
      %v507 = vrot.slane %v506, 2
      %v508 = vadd.f32 %v506, %v507
      %v509 = vrot.slane %v508, 1
      %v510 = vadd.f32 %v508, %v509
      %v511 = vrot.slane %v504, 4
      %v512 = vadd.f32 %v504, %v511
      %v513 = vrot.slane %v512, 2
      %v514 = vadd.f32 %v512, %v513
      %v515 = vrot.slane %v514, 1
      %v516 = vadd.f32 %v514, %v515
      %v517 = vlog2.pop %v510
      %v518 = vmul.f32 %v517, 0.6931472
      %v519 = vlog2.pop %v516
      %v520 = vmul.f32 %v519, 0.6931472
      %v521 = vadd.f32 %v492, %v518
      %v522 = vadd.f32 %v498, %v520
      %v523 = vlaneseq
      %v524 = vshrl.u32 %v523, 7
      %v525 = vsub.s32 0, %v524
      %v526 = vrot.slane %v484, %v525
      %v527 = vlaneseq
      %v528 = vshrl.u32 %v527, 7
      %v529 = vsub.s32 4, %v528
      %v530 = vrot.slane %v484, %v529
      %v531 = vlaneseq
      %v532 = vshrl.u32 %v531, 7
      %v533 = vsub.s32 0, %v532
      %v534 = vrot.slane %v526, %v533
      %v535 = vlaneseq
      %v536 = vshrl.u32 %v535, 7
      %v537 = vsub.s32 0, %v536
      %v538 = vrot.slane %v530, %v537
      %vm539 = vcmp.eq.s32.totalorder %v534, %v479
      %vm540 = vcmp.eq.s32.totalorder %v538, %v479
      %v541 = vsel %vm539, %v485, 0.0
      %v542 = vsel %vm540, %v486, 0.0
      %v543 = vrot.slane %v541, 4
      %v544 = vadd.f32 %v541, %v543
      %v545 = vrot.slane %v544, 2
      %v546 = vadd.f32 %v544, %v545
      %v547 = vrot.slane %v546, 1
      %v548 = vadd.f32 %v546, %v547
      %v549 = vrot.slane %v542, 4
      %v550 = vadd.f32 %v542, %v549
      %v551 = vrot.slane %v550, 2
      %v552 = vadd.f32 %v550, %v551
      %v553 = vrot.slane %v552, 1
      %v554 = vadd.f32 %v552, %v553
      %vm555 = vcmp.ne.s32.totalorder %v484, 255
      %v556 = vsel %vm482, 1, 0
      %v557 = vsel %vm483, 1, 0
      %v558 = vcombine.low %v556, %v557
      %vm559 = vcmp.ne.s32.totalorder %v558, 0
      %vm560 = vmand %vm555, %vm559
      %v561 = vsub.f32 %v521, %v548
      %v562 = vsub.f32 %v522, %v554
      %v565 = vcombine.low %v561, %v562
      %v567 = vsel %vm560, %v565, 0.0
      %v568 = vadd.f32 %v567, 0.0
      %v569 = vsel %vm560, 1, 0
      %v570 = vcvt.s32.f32 %v569
      %v571 = vadd.f32 %v570, 0.0
      %v572 = vld [vmem:[%s418] sm:$0xff]
      %v573 = vld [vmem:[%s418 + $0x8] sm:$0xff]
      %v574 = vrot.slane %v572, 4
      %v575 = vmax.f32 %v572, %v574
      %v576 = vrot.slane %v575, 2
      %v577 = vmax.f32 %v575, %v576
      %v578 = vrot.slane %v577, 1
      %v579 = vmax.f32 %v577, %v578
      %v580 = vrot.slane %v573, 4
      %v581 = vmax.f32 %v573, %v580
      %v582 = vrot.slane %v581, 2
      %v583 = vmax.f32 %v581, %v582
      %v584 = vrot.slane %v583, 1
      %v585 = vmax.f32 %v583, %v584
      %v586 = vsub.f32 %v572, %v579
      %v587 = vsub.f32 %v573, %v585
      %v588 = vmul.f32 %v586, 1.442695
      %v589 = vpow.pop %v588
      %v590 = vmul.f32 %v587, 1.442695
      %v591 = vpow.pop %v590
      %v592 = vrot.slane %v589, 4
      %v593 = vadd.f32 %v589, %v592
      %v594 = vrot.slane %v593, 2
      %v595 = vadd.f32 %v593, %v594
      %v596 = vrot.slane %v595, 1
      %v597 = vadd.f32 %v595, %v596
      %v598 = vrot.slane %v591, 4
      %v599 = vadd.f32 %v591, %v598
      %v600 = vrot.slane %v599, 2
      %v601 = vadd.f32 %v599, %v600
      %v602 = vrot.slane %v601, 1
      %v603 = vadd.f32 %v601, %v602
      %v604 = vlog2.pop %v597
      %v605 = vmul.f32 %v604, 0.6931472
      %v606 = vlog2.pop %v603
      %v607 = vmul.f32 %v606, 0.6931472
      %v608 = vadd.f32 %v579, %v605
      %v609 = vadd.f32 %v585, %v607
      %v610 = vlaneseq
      %v611 = vshrl.u32 %v610, 7
      %v612 = vsub.s32 1, %v611
      %v613 = vrot.slane %v484, %v612
      %v614 = vlaneseq
      %v615 = vshrl.u32 %v614, 7
      %v616 = vsub.s32 5, %v615
      %v617 = vrot.slane %v484, %v616
      %v618 = vlaneseq
      %v619 = vshrl.u32 %v618, 7
      %v620 = vsub.s32 1, %v619
      %v621 = vrot.slane %v613, %v620
      %v622 = vlaneseq
      %v623 = vshrl.u32 %v622, 7
      %v624 = vsub.s32 1, %v623
      %v625 = vrot.slane %v617, %v624
      %vm626 = vcmp.eq.s32.totalorder %v621, %v479
      %vm627 = vcmp.eq.s32.totalorder %v625, %v479
      %v628 = vsel %vm626, %v572, 0.0
      %v629 = vsel %vm627, %v573, 0.0
      %v630 = vrot.slane %v628, 4
      %v631 = vadd.f32 %v628, %v630
      %v632 = vrot.slane %v631, 2
      %v633 = vadd.f32 %v631, %v632
      %v634 = vrot.slane %v633, 1
      %v635 = vadd.f32 %v633, %v634
      %v636 = vrot.slane %v629, 4
      %v637 = vadd.f32 %v629, %v636
      %v638 = vrot.slane %v637, 2
      %v639 = vadd.f32 %v637, %v638
      %v640 = vrot.slane %v639, 1
      %v641 = vadd.f32 %v639, %v640
      %v642 = vrot.slane %v558, 7
      %vm643 = vcmp.ne.s32.totalorder %v642, 0
      %vm644 = vmand %vm555, %vm643
      %v645 = vsub.f32 %v608, %v635
      %v646 = vsub.f32 %v609, %v641
      %v649 = vcombine.low %v645, %v646
      %v650 = vrot.slane %v649, 7
      %v652 = vsel %vm644, %v650, 0.0
      %v653 = vadd.f32 %v652, 0.0
      %v654 = vsel %vm644, 1, 0
      %v655 = vcvt.s32.f32 %v654
      %v656 = vadd.f32 %v655, 0.0
      %v657 = vld [vmem:[%s434] sm:$0xff]
      %v658 = vld [vmem:[%s434 + $0x8] sm:$0xff]
      %v659 = vrot.slane %v657, 4
      %v660 = vmax.f32 %v657, %v659
      %v661 = vrot.slane %v660, 2
      %v662 = vmax.f32 %v660, %v661
      %v663 = vrot.slane %v662, 1
      %v664 = vmax.f32 %v662, %v663
      %v665 = vrot.slane %v658, 4
      %v666 = vmax.f32 %v658, %v665
      %v667 = vrot.slane %v666, 2
      %v668 = vmax.f32 %v666, %v667
      %v669 = vrot.slane %v668, 1
      %v670 = vmax.f32 %v668, %v669
      %v671 = vsub.f32 %v657, %v664
      %v672 = vsub.f32 %v658, %v670
      %v673 = vmul.f32 %v671, 1.442695
      %v674 = vpow.pop %v673
      %v675 = vmul.f32 %v672, 1.442695
      %v676 = vpow.pop %v675
      %v677 = vrot.slane %v674, 4
      %v678 = vadd.f32 %v674, %v677
      %v679 = vrot.slane %v678, 2
      %v680 = vadd.f32 %v678, %v679
      %v681 = vrot.slane %v680, 1
      %v682 = vadd.f32 %v680, %v681
      %v683 = vrot.slane %v676, 4
      %v684 = vadd.f32 %v676, %v683
      %v685 = vrot.slane %v684, 2
      %v686 = vadd.f32 %v684, %v685
      %v687 = vrot.slane %v686, 1
      %v688 = vadd.f32 %v686, %v687
      %v689 = vlog2.pop %v682
      %v690 = vmul.f32 %v689, 0.6931472
      %v691 = vlog2.pop %v688
      %v692 = vmul.f32 %v691, 0.6931472
      %v693 = vadd.f32 %v664, %v690
      %v694 = vadd.f32 %v670, %v692
      %v695 = vlaneseq
      %v696 = vshrl.u32 %v695, 7
      %v697 = vsub.s32 2, %v696
      %v698 = vrot.slane %v484, %v697
      %v699 = vlaneseq
      %v700 = vshrl.u32 %v699, 7
      %v701 = vsub.s32 6, %v700
      %v702 = vrot.slane %v484, %v701
      %v703 = vlaneseq
      %v704 = vshrl.u32 %v703, 7
      %v705 = vsub.s32 2, %v704
      %v706 = vrot.slane %v698, %v705
      %v707 = vlaneseq
      %v708 = vshrl.u32 %v707, 7
      %v709 = vsub.s32 2, %v708
      %v710 = vrot.slane %v702, %v709
      %vm711 = vcmp.eq.s32.totalorder %v706, %v479
      %vm712 = vcmp.eq.s32.totalorder %v710, %v479
      %v713 = vsel %vm711, %v657, 0.0
      %v714 = vsel %vm712, %v658, 0.0
      %v715 = vrot.slane %v713, 4
      %v716 = vadd.f32 %v713, %v715
      %v717 = vrot.slane %v716, 2
      %v718 = vadd.f32 %v716, %v717
      %v719 = vrot.slane %v718, 1
      %v720 = vadd.f32 %v718, %v719
      %v721 = vrot.slane %v714, 4
      %v722 = vadd.f32 %v714, %v721
      %v723 = vrot.slane %v722, 2
      %v724 = vadd.f32 %v722, %v723
      %v725 = vrot.slane %v724, 1
      %v726 = vadd.f32 %v724, %v725
      %v727 = vrot.slane %v558, 6
      %vm728 = vcmp.ne.s32.totalorder %v727, 0
      %vm729 = vmand %vm555, %vm728
      %v730 = vsub.f32 %v693, %v720
      %v731 = vsub.f32 %v694, %v726
      %v734 = vcombine.low %v730, %v731
      %v735 = vrot.slane %v734, 6
      %v737 = vsel %vm729, %v735, 0.0
      %v738 = vadd.f32 %v737, 0.0
      %v739 = vsel %vm729, 1, 0
      %v740 = vcvt.s32.f32 %v739
      %v741 = vadd.f32 %v740, 0.0
      %v742 = vld [vmem:[%s459] sm:$0x77]
      %v744 = vlaneseq
      %v745 = vshrl.u32 %v744, 7
      %v746 = vsub.s32 0, %v745
      %v747 = vrot.slane %v568, %v746
      %v748 = vlaneseq
      %v749 = vshrl.u32 %v748, 7
      %v750 = vsub.s32 4, %v749
      %v751 = vrot.slane %v568, %v750
      %v755 = vlaneseq
      %v756 = vshrl.u32 %v755, 7
      %v757 = vsub.s32 1, %v756
      %v758 = vrot.slane %v653, %v757
      %v759 = vlaneseq
      %v760 = vshrl.u32 %v759, 7
      %v761 = vsub.s32 5, %v760
      %v762 = vrot.slane %v653, %v761
      %v766 = vlaneseq
      %v767 = vshrl.u32 %v766, 7
      %v768 = vsub.s32 2, %v767
      %v769 = vrot.slane %v738, %v768
      %v770 = vlaneseq
      %v771 = vshrl.u32 %v770, 7
      %v772 = vsub.s32 6, %v771
      %v773 = vrot.slane %v738, %v772
      %vm776 = vcmask 1040384
      %v777 = vsel %vm776, %v747, %v758
      %v778 = vsel %vm776, %v751, %v762
      %vm779 = vcmask 1041408
      %v780 = vsel %vm779, %v777, %v769
      %v781 = vsel %vm779, %v778, %v773
      %v784 = vcombine.low %v780, %v781
      %v786 = vadd.f32 %v742, %v784
      %787 = vst [vmem:[%s459] sm:$0x77] %v786
      %v788 = vld [vmem:[%s464] sm:$0x77]
      %v790 = vlaneseq
      %v791 = vshrl.u32 %v790, 7
      %v792 = vsub.s32 0, %v791
      %v793 = vrot.slane %v571, %v792
      %v794 = vlaneseq
      %v795 = vshrl.u32 %v794, 7
      %v796 = vsub.s32 4, %v795
      %v797 = vrot.slane %v571, %v796
      %v801 = vlaneseq
      %v802 = vshrl.u32 %v801, 7
      %v803 = vsub.s32 1, %v802
      %v804 = vrot.slane %v656, %v803
      %v805 = vlaneseq
      %v806 = vshrl.u32 %v805, 7
      %v807 = vsub.s32 5, %v806
      %v808 = vrot.slane %v656, %v807
      %v812 = vlaneseq
      %v813 = vshrl.u32 %v812, 7
      %v814 = vsub.s32 2, %v813
      %v815 = vrot.slane %v741, %v814
      %v816 = vlaneseq
      %v817 = vshrl.u32 %v816, 7
      %v818 = vsub.s32 6, %v817
      %v819 = vrot.slane %v741, %v818
      %v822 = vsel %vm776, %v793, %v804
      %v823 = vsel %vm776, %v797, %v808
      %v824 = vsel %vm779, %v822, %v815
      %v825 = vsel %vm779, %v823, %v819
      %v828 = vcombine.low %v824, %v825
      %v830 = vadd.f32 %v788, %v828
      %831 = vst [vmem:[%s464] sm:$0x77] %v830
      %p832 = scmp.lt.s32.totalorder %s22, 0
      %s833 = scalar_select %p832, %s22, 0
      %s834 = smul.addr %s833, 2
      %s835 = smul.addr %s834, 4
      %s836 = scalar_lea.vmem %s4, %s835
      %p837 = scmp.lt.s32.totalorder %s22, 0
      %s838 = scalar_select %p837, %s22, 0
      %s839 = smul.addr %s838, 2
      %s840 = smul.addr %s839, 4
      %s841 = scalar_lea.vmem %s5, %s840
      // Predicated region
      $region41: #{adversarial_loss.1} parent=35 // pred_check
        %p842 = pneg %p190
      $region42: #{adversarial_loss.1} parent=35 // pred_check_branch
        %844 = sbr.rel (%p842) target = $region44
      $region43: #{adversarial_loss.1} parent=35 // pred_region
        _
      $region44: #{adversarial_loss.1} parent=35 // pred_fallthru
        _
      // Predicated region
      $region45: #{adversarial_loss.1} parent=35 // pred_check
        %p845 = pneg %p216
      $region46: #{adversarial_loss.1} parent=35 // pred_check_branch
        %847 = sbr.rel (%p845) target = $region48
      $region47: #{adversarial_loss.1} parent=35 // pred_region
        _
      $region48: #{adversarial_loss.1} parent=35 // pred_fallthru
        _
      // Predicated region
      $region49: #{adversarial_loss.1} parent=35 // pred_check
        %p848 = pneg %p190
      $region50: #{adversarial_loss.1} parent=35 // pred_check_branch
        %850 = sbr.rel (%p848) target = $region52
      $region51: #{adversarial_loss.1} parent=35 // pred_region
        %p851 = scmp.lt.s32.totalorder %s22, 0
        %s852 = scalar_select %p851, %s22, 0
        %s853 = smul.addr %s852, 2
        %s854 = smul.addr %s853, 4
        %s855 = scalar_lea.vmem %s4, %s854
      $region52: #{adversarial_loss.1} parent=35 // pred_fallthru
        _
      // Predicated region
      $region53: #{adversarial_loss.1} parent=35 // pred_check
        %p856 = pneg %p216
      $region54: #{adversarial_loss.1} parent=35 // pred_check_branch
        %858 = sbr.rel (%p856) target = $region56
      $region55: #{adversarial_loss.1} parent=35 // pred_region
        %p859 = scmp.lt.s32.totalorder %s22, 0
        %s860 = scalar_select %p859, %s22, 0
        %s861 = smul.addr %s860, 2
        %s862 = smul.addr %s861, 4
        %s863 = scalar_lea.vmem %s5, %s862
      $region56: #{adversarial_loss.1} parent=35 // pred_fallthru
        _
    $region36: #{adversarial_loss.1} parent=5 // pred_fallthru
      _
    %p864 = scmp.le.s32.totalorder 2, %s12
    // Predicated region
    $region57: #{adversarial_loss.1} parent=5 // pred_check
      %p865 = pneg %p864
    $region58: #{adversarial_loss.1} parent=5 // pred_check_branch
      %867 = sbr.rel (%p865) target = $region60
    $region59: #{adversarial_loss.1} parent=5 // pred_region
      %s868 = ssub.s32 %s12, 2
    $region60: #{adversarial_loss.1} parent=5 // pred_fallthru
      _
  $region6: #{adversarial_loss.1} parent=0 // loop_footer
    %s16 = sadd.s32 1, %s12
  $region7: #{adversarial_loss.1} parent=0 // loop_footer_branch
    %11 = sbr.rel target = $region3
  $region8: #{adversarial_loss.1} parent=0 // loop_exit
    _

</llo_original>
